<compile_context>
chip_gen: v7x
topology: tpu7x:2x2x1
jax: 0.10.0
libtpu: 0.0.40
codegen_flags: <defaults>
</compile_context>

<pallas_src>
import jax
import jax.numpy as jnp
from jax.experimental import pallas as pl
from jax.experimental.pallas import tpu as pltpu


def tanh_kernel(x_ref, o_ref):
    # Elementwise tanh on the current VMEM tile (EUP transcendental slot).
    o_ref[...] = jnp.tanh(x_ref[...]).astype(o_ref.dtype)


def _device_budgets():
    """(block_bytes, vmem_limit_bytes) sized from this chip's VMEM capacity."""
    cap = 64 * 1024 * 1024  # conservative default: v7x per-TensorCore VMEM
    try:
        info = pltpu.get_tpu_info()
        cap = int(getattr(info, "vmem_capacity_bytes", cap))
    except Exception:
        pass
    vmem_limit = min((cap * 3) // 4, 64 * 1024 * 1024)  # 48 MiB v7x, 64 MiB v5e/v6e
    block_bytes = vmem_limit // 4                        # double-buffered in + out
    return block_bytes, vmem_limit


def _pick_cols(n, sublane, max_cols=8192):
    """Largest 128-multiple divisor of n (<= max_cols), preferring widths that keep
    rows = n // cols >= 2*sublane so tiles stay sublane-dense and splittable.
    Returns None if n is not a multiple of 128."""
    if n % 128 != 0:
        return None
    k = n // 128
    pref_cap = max(1, min(max_cols, n // max(2 * sublane, 1)) // 128)
    for d in range(min(max_cols // 128, k), 0, -1):
        if k % d == 0 and d <= pref_cap:
            return 128 * d
    return 128


def _tanh_2d(x2d, block_rows, grid_rows, vmem_limit_bytes):
    rows, cols = x2d.shape
    return pl.pallas_call(
        tanh_kernel,
        out_shape=jax.ShapeDtypeStruct((rows, cols), x2d.dtype),
        grid=(grid_rows,),
        in_specs=[pl.BlockSpec((block_rows, cols), lambda i: (i, 0))],
        out_specs=pl.BlockSpec((block_rows, cols), lambda i: (i, 0)),
        compiler_params=pltpu.CompilerParams(
            dimension_semantics=("parallel",),
            vmem_limit_bytes=vmem_limit_bytes,
        ),
    )(x2d)


def pallas_tanh(x, *, block_bytes=None, vmem_limit_bytes=None):
    """Elementwise tanh via Pallas. Accepts any rank/shape; dtype preserved."""
    orig_shape = x.shape
    dtype = x.dtype
    n = int(x.size)
    if n == 0:
        return x

    dev_block, dev_limit = _device_budgets()
    if block_bytes is None:
        block_bytes = dev_block
    if vmem_limit_bytes is None:
        vmem_limit_bytes = dev_limit

    itemsize = jnp.dtype(dtype).itemsize
    # Sublane packing: 8 rows for 32-bit, 16 for bf16, 32 for 8-bit dtypes.
    sublane = 8 * max(1, 4 // itemsize)

    cols = _pick_cols(n, sublane)
    if cols is None:
        # Element count is not a multiple of 128 (rare for NN activations).
        if n * itemsize <= 256 * 1024:
            # Tiny & awkward: pallas_call launch overhead dominates and a 1-row
            # layout wastes 8-32x VMEM; XLA's fused tanh is strictly better.
            return jnp.tanh(x)
        # Large & awkward: kernel on the 128-aligned prefix, jnp.tanh on the
        # <128-element tail (avoids the old pad/concat + output-slice passes).
        # TODO(synk): a masked 1-D partial-final-block BlockSpec could remove the
        # remaining concat pass as well.
        flat = x.reshape(-1)
        n_main = (n // 128) * 128
        head = pallas_tanh(flat[:n_main], block_bytes=block_bytes,
                           vmem_limit_bytes=vmem_limit_bytes)
        tail = jnp.tanh(flat[n_main:])
        return jnp.concatenate([head, tail]).reshape(orig_shape)

    rows = n // cols
    x2d = x.reshape(rows, cols)
    row_bytes = cols * itemsize

    if rows <= sublane:
        # Too few rows to split into sublane-aligned blocks: single full block.
        block_rows, grid_rows = rows, 1
    else:
        # Rows per block from the byte budget, rounded to the sublane packing.
        max_br = max(sublane, (block_bytes // row_bytes) // sublane * sublane)
        # Always >= 2 blocks (even count) so the DMA-in of block i+1 overlaps the
        # writeback of block i, and v7x's two TensorCores both get balanced work.
        n_blocks = max(2, pl.cdiv(rows, max_br))
        if n_blocks % 2:
            n_blocks += 1
        block_rows = pl.cdiv(pl.cdiv(rows, n_blocks), sublane) * sublane
        grid_rows = pl.cdiv(rows, block_rows)

    out2d = _tanh_2d(x2d, block_rows, grid_rows, vmem_limit_bytes)
    return out2d.reshape(orig_shape)


if __name__ == "__main__":
    key = jax.random.PRNGKey(0)
    k1, k2, k3 = jax.random.split(key, 3)

    # Small inputs consistent with a generic activation module.
    x1 = jax.random.normal(k1, (2, 4, 16, 16), dtype=jnp.float32)   # main Pallas path
    x2 = jax.random.normal(k2, (2, 32), dtype=jnp.float32)          # awkward (non-128) path
    x3 = jax.random.normal(k3, (16, 256), dtype=jnp.float32).astype(jnp.bfloat16)

    y1 = pallas_tanh(x1)
    y2 = pallas_tanh(x2)
    y3 = pallas_tanh(x3)
    jax.block_until_ready((y1, y2, y3))

    # Correctness checks against plain JAX tanh.
    assert y1.shape == x1.shape and y1.dtype == x1.dtype
    assert y2.shape == x2.shape and y2.dtype == x2.dtype
    assert y3.shape == x3.shape and y3.dtype == x3.dtype
    assert jnp.allclose(y1, jnp.tanh(x1), atol=1e-6, rtol=1e-6)
    assert jnp.allclose(y2, jnp.tanh(x2), atol=1e-6, rtol=1e-6)
    assert jnp.allclose(y3.astype(jnp.float32),
                        jnp.tanh(x3.astype(jnp.float32)), atol=2e-2, rtol=2e-2)

    print("KERNEL_OK")
</pallas_src>

<mosaic_0001>
module attributes {stable_mosaic.version = 11 : i64} {
  func.func @tanh_kernel(%arg0: i32, %arg1: memref<8x128xf32, #tpu.memory_space<vmem>>, %arg2: memref<8x128xf32, #tpu.memory_space<vmem>>) attributes {dimension_semantics = [#tpu.dimension_semantics<parallel>], iteration_bounds = array<i64: 2>, scalar_prefetch = 0 : i64, scratch_operands = 0 : i64, tpu.core_type = #tpu.core_type<tc>, window_params = [{transform_indices = @transform_0, window_bounds = array<i64: 8, 128>}, {transform_indices = @transform_1, window_bounds = array<i64: 8, 128>}]} {
    %c0 = arith.constant 0 : index
    %c0_0 = arith.constant 0 : index
    %0 = vector.load %arg1[%c0, %c0_0] : memref<8x128xf32, #tpu.memory_space<vmem>>, vector<8x128xf32>
    %1 = math.tanh %0 : vector<8x128xf32>
    %c0_1 = arith.constant 0 : index
    %c0_2 = arith.constant 0 : index
    %2 = vector.load %arg2[%c0_1, %c0_2] : memref<8x128xf32, #tpu.memory_space<vmem>>, vector<8x128xf32>
    tpu.vector_store %arg2[%c0_1, %c0_2], %1 {strides = array<i32>} : memref<8x128xf32, #tpu.memory_space<vmem>>, vector<8x128xf32>,
    return
  }
  func.func @transform_0(%arg0: i32) -> (i32, i32) {
    %c0_i32 = arith.constant 0 : i32
    %c0_i32_0 = arith.constant 0 : i32
    return %arg0, %c0_i32 : i32, i32
  }
  func.func @transform_1(%arg0: i32) -> (i32, i32) {
    %c0_i32 = arith.constant 0 : i32
    %c0_i32_0 = arith.constant 0 : i32
    return %arg0, %c0_i32 : i32, i32
  }
}

</mosaic_0001>

<llo_original>
// kernel: tpu_custom_call.1
$region0: #{tpu_custom_call.1}
  #allocation0 [shape = 'u32[]', space=smem, size = 0x4, offset = 0x4, fixed_abs, tag = 'smem constant byte address 0x4 - core index']
  #allocation1 [shape = 'u32[144,128]{1,0:T(1,128)}', space=vmem, size = 0x12000, scoped, tag = 'internal scratch']
  %s0 = inlined_call_operand.hbm [shape: f32[16,128], index: 0, kind: input, shape index: {}]
  %s1 = inlined_call_operand.hbm [shape: f32[16,128], index: 1, kind: output, shape index: {}]
  %s2 = sld [smem:[#allocation0]]
  $region41: #{tpu_custom_call.1} parent=0
    _
  %s4 = ssub.s32 1, %s2
  %s5 = scalar_select 0, %s4, %s2
  $region1: #{tpu_custom_call.1} parent=0
    #allocation2 [shape = 'u8[8192]{0}', space=vmem, size = 0x2000, scoped, tag = 'input window, operand 0']
    #allocation3 [shape = 's32[2]{0}', space=sflag, size = 0x8, scoped, tag = 'scoped memory for tpu_custom_call.1']
    #allocation4 [shape = 's32[2]{0}', space=sflag, size = 0x8, scoped, tag = 'scoped memory for tpu_custom_call.1']
    #allocation5 [shape = 'u8[8192]{0}', space=vmem, size = 0x2000, scoped, tag = 'output window, operand 0']
    %6 = vsyncpa [#allocation3], 0
    %s7 = scalar_lea.sflag [#allocation3], 1
    %8 = vsyncpa %s7, 0
    %9 = vsyncpa [#allocation4], 0
    %s10 = scalar_lea.sflag [#allocation4], 1
    %11 = vsyncpa %s10, 0
    loop: start=0, step=1, limit=4
    $region2: #{tpu_custom_call.1} parent=1 // loop_pre_header
      _
    $region3: #{tpu_custom_call.1} parent=1 // loop_header
      %s13 = sphi 0, %s17
      %p14 = scmp.ge.s32.totalorder %s13, 4
      %s23 = sphi 0, %s25
      %s26 = sphi 0, %s23
      %s27 = sphi 0, %s26
      %s43 = sphi 0, %s27
      %s49 = sphi 0, %s51
      %s52 = sphi 0, %s49
      %s53 = sphi 0, %s52
      %s69 = sphi 0, %s53
    $region4: #{tpu_custom_call.1} parent=1 // loop_header_branch
      %16 = sbr.rel (%p14) target = $region8
    $region5: #{tpu_custom_call.1} parent=1 // loop_body
      %s18 = ssub.s32 %s13, 1
      %s19 = ssub.s32 %s13, 2
      %s20 = sadd.s32 %s13, 1
      %s21 = ssub.s32 %s13, %s20
      %p22 = scmp.eq.s32.totalorder %s21, 0
      %s24 = sadd.s32 %s23, 1
      %s25 = scalar_select %p22, %s23, %s24
      %p28 = pneg %p22
      %p29 = scmp.eq.s32.totalorder %s13, 1
      %p30 = por %p28, %p29
      %p31 = scmp.ne.s32.totalorder %s23, %s26
      %p32 = scmp.eq.s32.totalorder %s13, 0
      %p33 = por %p31, %p32
      %p34 = scmp.ne.s32.totalorder %s23, %s26
      %p35 = scmp.eq.s32.totalorder %s18, 1
      %p36 = por %p34, %p35
      %p37 = scmp.ne.s32.totalorder %s26, %s27
      %p38 = scmp.eq.s32.totalorder %s18, 0
      %p39 = por %p37, %p38
      %p40 = scmp.ne.s32.totalorder %s26, %s27
      %p41 = scmp.eq.s32.totalorder %s19, 1
      %p42 = por %p40, %p41
      %p44 = scmp.ne.s32.totalorder %s27, %s43
      %p45 = scmp.eq.s32.totalorder %s19, 0
      %p46 = por %p44, %p45
      %s47 = ssub.s32 %s13, %s20
      %p48 = scmp.eq.s32.totalorder %s47, 0
      %s50 = sadd.s32 %s49, 1
      %s51 = scalar_select %p48, %s49, %s50
      %p54 = pneg %p48
      %p55 = scmp.eq.s32.totalorder %s13, 1
      %p56 = por %p54, %p55
      %p57 = scmp.ne.s32.totalorder %s49, %s52
      %p58 = scmp.eq.s32.totalorder %s13, 0
      %p59 = por %p57, %p58
      %p60 = scmp.ne.s32.totalorder %s49, %s52
      %p61 = scmp.eq.s32.totalorder %s18, 1
      %p62 = por %p60, %p61
      %p63 = scmp.ne.s32.totalorder %s52, %s53
      %p64 = scmp.eq.s32.totalorder %s18, 0
      %p65 = por %p63, %p64
      %p66 = scmp.ne.s32.totalorder %s52, %s53
      %p67 = scmp.eq.s32.totalorder %s19, 1
      %p68 = por %p66, %p67
      %p70 = scmp.ne.s32.totalorder %s53, %s69
      %p71 = scmp.eq.s32.totalorder %s19, 0
      %p72 = por %p70, %p71
      %p73 = scmp.le.s32.totalorder 1, %s13
      %p74 = scmp.lt.s32.totalorder %s13, 3
      %p75 = pnand %p73, %p74
      %p76 = pneg %p75
      // Predicated region
      $region9: #{tpu_custom_call.1} parent=5 // pred_check
        _
      $region10: #{tpu_custom_call.1} parent=5 // pred_check_branch
        %78 = sbr.rel (%p75) target = $region12
      $region11: #{tpu_custom_call.1} parent=5 // pred_region
        %s79 = ssub.s32 %s13, 1
      $region12: #{tpu_custom_call.1} parent=5 // pred_fallthru
        _
      %p80 = scmp.lt.s32.totalorder %s13, 2
      // Predicated region
      $region13: #{tpu_custom_call.1} parent=5 // pred_check
        %p81 = pneg %p80
      $region14: #{tpu_custom_call.1} parent=5 // pred_check_branch
        %83 = sbr.rel (%p81) target = $region16
      $region15: #{tpu_custom_call.1} parent=5 // pred_region
        // Predicated region
        $region17: #{tpu_custom_call.1} parent=15 // pred_check
          %p84 = pneg %p33
        $region18: #{tpu_custom_call.1} parent=15 // pred_check_branch
          %86 = sbr.rel (%p84) target = $region20
        $region19: #{tpu_custom_call.1} parent=15 // pred_region
          %s87 = sand.u32 %s23, 1
          %s88 = scalar_lea.sflag [#allocation3], %s87
          %s89 = sand.u32 %s23, 1
          %s90 = smul.addr %s89, 8
          %s91 = scalar_lea.vmem [#allocation2], %s90
          %s93 = ssub.s32 128, 128
          %94 = vsyncadd %s88, %s93
          %s95 = smul.addr %s13, 128
          %s96 = scalar_lea.hbm %s0, %s95
          %s98 = sshll.u32 %s91, 4
          %s99 = int_to_ptr.vmem [resolvable:$true] %s98
          %101 = dma.hbm_to_vmem [thread:$0]  %s96, 128, %s99, %s88
        $region20: #{tpu_custom_call.1} parent=15 // pred_fallthru
          _
      $region16: #{tpu_custom_call.1} parent=5 // pred_fallthru
        _
      %p102 = scmp.le.s32.totalorder 1, %s13
      %p103 = scmp.lt.s32.totalorder %s13, 3
      %p104 = pnand %p102, %p103
      %p105 = pneg %p104
      // Predicated region
      $region21: #{tpu_custom_call.1} parent=5 // pred_check
        _
      $region22: #{tpu_custom_call.1} parent=5 // pred_check_branch
        %107 = sbr.rel (%p104) target = $region24
      $region23: #{tpu_custom_call.1} parent=5 // pred_region
        %s108 = ssub.s32 %s13, 1
        %s109 = sand.u32 %s26, 1
        %s110 = scalar_lea.sflag [#allocation3], %s109
        %s111 = sand.u32 %s26, 1
        %s112 = smul.addr %s111, 8
        %s113 = scalar_lea.vmem [#allocation2], %s112
        // Predicated region
        $region25: #{tpu_custom_call.1} parent=23 // pred_check
          %p114 = pneg %p39
        $region26: #{tpu_custom_call.1} parent=23 // pred_check_branch
          %116 = sbr.rel (%p114) target = $region28
        $region27: #{tpu_custom_call.1} parent=23 // pred_region
          %117 = dma.done %s110, 128
        $region28: #{tpu_custom_call.1} parent=23 // pred_fallthru
          _
        %s118 = sand.u32 %s26, 1
        %s119 = scalar_lea.sflag [#allocation3], %s118
        %s120 = sand.u32 %s26, 1
        %s121 = smul.addr %s120, 8
        %s122 = scalar_lea.vmem [#allocation2], %s121
        %p123 = pneg %p39
        %p124 = pneg %p36
        %p125 = pneg %p65
        %p126 = pneg %p62
        %s127 = sand.u32 %s52, 1
        %s128 = scalar_lea.sflag [#allocation4], %s127
        %s129 = sand.u32 %s52, 1
        %s130 = smul.addr %s129, 8
        %s131 = scalar_lea.vmem [#allocation5], %s130
        %v132 = vld [vmem:[%s113] sm:$0xff]
        %v133 = vtanh.pop %v132
        %134 = vst [vmem:[%s131] sm:$0xff] %v133
        %s135 = sand.u32 %s52, 1
        %s136 = scalar_lea.sflag [#allocation4], %s135
        %s137 = sand.u32 %s52, 1
        %s138 = smul.addr %s137, 8
        %s139 = scalar_lea.vmem [#allocation5], %s138
        // Predicated region
        $region29: #{tpu_custom_call.1} parent=23 // pred_check
          %p140 = pneg %p62
        $region30: #{tpu_custom_call.1} parent=23 // pred_check_branch
          %142 = sbr.rel (%p140) target = $region32
        $region31: #{tpu_custom_call.1} parent=23 // pred_region
          %s144 = ssub.s32 128, 128
          %145 = vsyncadd %s136, %s144
          %s146 = smul.addr %s18, 128
          %s147 = scalar_lea.hbm %s1, %s146
          %s149 = sshll.u32 %s139, 4
          %s150 = int_to_ptr.vmem [resolvable:$true] %s149
          %152 = dma.vmem_to_hbm [thread:$0]  %s150, 128, %s147, %s136
        $region32: #{tpu_custom_call.1} parent=23 // pred_fallthru
          _
      $region24: #{tpu_custom_call.1} parent=5 // pred_fallthru
        _
      %p153 = scmp.le.s32.totalorder 2, %s13
      // Predicated region
      $region33: #{tpu_custom_call.1} parent=5 // pred_check
        %p154 = pneg %p153
      $region34: #{tpu_custom_call.1} parent=5 // pred_check_branch
        %156 = sbr.rel (%p154) target = $region36
      $region35: #{tpu_custom_call.1} parent=5 // pred_region
        %s157 = ssub.s32 %s13, 2
        // Predicated region
        $region37: #{tpu_custom_call.1} parent=35 // pred_check
          %p158 = pneg %p68
        $region38: #{tpu_custom_call.1} parent=35 // pred_check_branch
          %160 = sbr.rel (%p158) target = $region40
        $region39: #{tpu_custom_call.1} parent=35 // pred_region
          %s161 = sand.u32 %s53, 1
          %s162 = scalar_lea.sflag [#allocation4], %s161
          %s163 = sand.u32 %s53, 1
          %s164 = smul.addr %s163, 8
          %s165 = scalar_lea.vmem [#allocation5], %s164
          %166 = dma.done %s162, 128
        $region40: #{tpu_custom_call.1} parent=35 // pred_fallthru
          _
      $region36: #{tpu_custom_call.1} parent=5 // pred_fallthru
        _
    $region6: #{tpu_custom_call.1} parent=1 // loop_footer
      %s17 = sadd.s32 1, %s13
    $region7: #{tpu_custom_call.1} parent=1 // loop_footer_branch
      %12 = sbr.rel target = $region3
    $region8: #{tpu_custom_call.1} parent=1 // loop_exit
      _
    %167 = vsyncpa [#allocation3], 1
    %s168 = scalar_lea.sflag [#allocation3], 1
    %169 = vsyncpa %s168, 1
    %170 = vsyncpa [#allocation4], 1
    %s171 = scalar_lea.sflag [#allocation4], 1
    %172 = vsyncpa %s171, 1

</llo_original>
